<compile_context>
chip_gen: v6e
topology: v6e:2x2x1
jax: 0.10.0
libtpu: 0.0.40
codegen_flags: <defaults>
</compile_context>

<pallas_src>
import functools
import math

import jax
import jax.numpy as jnp
import numpy as np
from jax.experimental import pallas as pl
from jax.experimental.pallas import tpu as pltpu


def _round_up(x, m):
    return (x + m - 1) // m * m


# ----------------------------------------------------------------------------
# Pallas kernel: full forward pass for one batch (lane) tile.
# ----------------------------------------------------------------------------
def _network_kernel(x_ref, w_ref, a_ref, b_ref, s15_ref, s05_ref, o_ref,
                    *, depth, precision):
    x = x_ref[...]                                         # (width, tb) f32
    for i in range(depth):
        # OrthogonalButterfly layer i, collapsed into one (width,width) matmul.
        x = jnp.dot(w_ref[i], x,
                    preferred_element_type=jnp.float32,
                    precision=precision)
        # CubicSquashActivation (between layers, not after the last), with
        # host-folded constants: u = clip(x*a - b'); y = 1.5*sc*u - 0.5*sc*u^3
        if i != depth - 1:
            u = jnp.clip(x * a_ref[i] - b_ref[i], -1.0, 1.0)
            x = s15_ref[i] * u - s05_ref[i] * (u * u * u)
    o_ref[...] = x.astype(o_ref.dtype)


# ----------------------------------------------------------------------------
# Host-side (plain numpy) parameter preparation.
# ----------------------------------------------------------------------------
def build_butterfly_stage_matrices(angles, width_pow):
    """Per-stage sparse Givens-rotation matrices, (depth, bfly_depth, w, w) f64."""
    angles = np.asarray(angles, dtype=np.float64)
    depth, bfly_depth, half = angles.shape
    width = 2 ** width_pow
    assert half == width // 2
    mats = np.zeros((depth, bfly_depth, width, width), dtype=np.float64)
    for i in range(depth):
        for j in range(bfly_depth):
            s = 2 ** (j % width_pow)
            w = np.zeros((width, width), dtype=np.float64)
            for p in range(half):
                blk, k = divmod(p, s)
                a = blk * 2 * s + k
                b = a + s
                c = math.cos(angles[i, j, p])
                sn = math.sin(angles[i, j, p])
                w[a, a] = c
                w[a, b] = sn
                w[b, a] = -sn
                w[b, b] = c
            mats[i, j] = w
    return mats


def collapse_butterfly_layers(stage_mats):
    """Fold each layer's bfly_depth stages into one matrix (f64 product)."""
    depth, bfly_depth, width, _ = stage_mats.shape
    out = np.zeros((depth, width, width), dtype=np.float64)
    for i in range(depth):
        acc = np.eye(width, dtype=np.float64)
        for j in range(bfly_depth):
            acc = stage_mats[i, j] @ acc      # stage j is applied after j-1
        out[i] = acc
    return out


# ----------------------------------------------------------------------------
# Wrapper: pad, pick lane tile, run the Pallas kernel, slice outputs.
# ----------------------------------------------------------------------------
def custom_network_forward(X, W_layers, act_a, act_b, act_s15, act_s05,
                           *, num_outputs, width_pow, depth, precision=None):
    width = 2 ** width_pow
    num_inputs, batch = X.shape
    assert W_layers.shape == (depth, width, width)
    n_act = act_a.shape[0]

    # Host-side glue: feature zero-padding (torch.cat equivalent) plus batch
    # padding to a multiple of 128 lanes (lane-dense, unmasked stores).
    padded_batch = _round_up(batch, 128)
    x_in = jnp.zeros((width, padded_batch), X.dtype).at[:num_inputs, :batch].set(X)

    # Batch (lane) tile: as large as 512, but keep >= 2 grid steps when
    # possible so the "parallel" axis can shard across v7x's two TensorCores.
    tb = 128
    for cand in (512, 256):
        if padded_batch % cand == 0 and padded_batch // cand >= 2:
            tb = cand
            break
    grid = (padded_batch // tb,)

    kernel = functools.partial(_network_kernel, depth=depth, precision=precision)

    flops = (2 * depth * width * width * padded_batch
             + 8 * max(depth - 1, 0) * width * padded_batch)
    bytes_accessed = 4 * (2 * width * padded_batch
                          + depth * width * width
                          + 4 * n_act * width)
    cost = pl.CostEstimate(flops=flops, transcendentals=0,
                           bytes_accessed=bytes_accessed)

    # VMEM budget: double-buffered in/out tiles + resident params, with 2x
    # headroom, capped at v7x's 64 MiB physical VMEM.
    vmem_bytes = 4 * (2 * width * tb * 2            # x + out tiles, double-buffered
                      + 2 * depth * width * width   # collapsed W
                      + 2 * 4 * n_act * width)      # folded activation constants
    vmem_limit = int(min(max(2 * vmem_bytes, 1 << 20), 64 << 20))

    out = pl.pallas_call(
        kernel,
        out_shape=jax.ShapeDtypeStruct((width, padded_batch), X.dtype),
        grid_spec=pltpu.PrefetchScalarGridSpec(
            num_scalar_prefetch=0,
            grid=grid,
            in_specs=[
                pl.BlockSpec((width, tb), lambda b: (0, b)),               # X tile
                pl.BlockSpec((depth, width, width), lambda b: (0, 0, 0)),  # collapsed W
                pl.BlockSpec((n_act, width, 1), lambda b: (0, 0, 0)),      # slope/scale
                pl.BlockSpec((n_act, width, 1), lambda b: (0, 0, 0)),      # bias/scale
                pl.BlockSpec((n_act, width, 1), lambda b: (0, 0, 0)),      # 1.5*scale
                pl.BlockSpec((n_act, width, 1), lambda b: (0, 0, 0)),      # 0.5*scale
            ],
            out_specs=pl.BlockSpec((width, tb), lambda b: (0, b)),
        ),
        compiler_params=pltpu.CompilerParams(
            dimension_semantics=("parallel",),
            vmem_limit_bytes=vmem_limit),
        cost_estimate=cost,
    )(x_in, W_layers, act_a, act_b, act_s15, act_s05)

    return out[:num_outputs, :batch]


# ----------------------------------------------------------------------------
# Pure-JAX reference (mirrors the PyTorch forward, per-stage HIGHEST matmuls).
# ----------------------------------------------------------------------------
def reference_forward(X, stage_mats_f32, act_bias, act_slope, act_scale,
                      *, num_outputs, width_pow, depth, bfly_depth):
    width = 2 ** width_pow
    x = jnp.concatenate(
        [X, jnp.zeros((width - X.shape[0], X.shape[1]), X.dtype)], axis=0)
    for i in range(depth):
        for j in range(bfly_depth):
            x = jnp.dot(stage_mats_f32[i, j], x,
                        precision=jax.lax.Precision.HIGHEST)
        if i != depth - 1:
            u = jnp.clip((x * act_slope[i] - act_bias[i]) / act_scale[i],
                         -1.0, 1.0)
            x = act_scale[i] * (1.5 * u - 0.5 * u ** 3)
    return x[:num_outputs, :]


if __name__ == "__main__":
    # Small, deterministic configuration.
    num_inputs, num_outputs = 10, 6
    width_pow, depth, bfly_depth = 5, 3, 5          # width = 32
    width = 2 ** width_pow
    batch = 256
    eps = 1e-3

    key = jax.random.PRNGKey(0)
    kx, ka, kb, ks, kc = jax.random.split(key, 5)

    X = jax.random.normal(kx, (num_inputs, batch), dtype=jnp.float32)

    # OrthogonalButterfly params: one rotation angle per (layer, stage, pair).
    angles = jax.random.uniform(ka, (depth, bfly_depth, width // 2),
                                dtype=jnp.float32) * (2.0 * math.pi)
    stage_mats = build_butterfly_stage_matrices(np.asarray(angles), width_pow)
    W_layers = jnp.asarray(collapse_butterfly_layers(stage_mats), jnp.float32)
    stage_mats_f32 = jnp.asarray(stage_mats, jnp.float32)

    # CubicSquashActivation params (depth - 1 activations), (width, 1) columns.
    act_bias = (jax.random.uniform(kb, (depth - 1, width, 1),
                                   dtype=jnp.float32) * 2 * eps - eps)
    act_slope = (jax.random.uniform(ks, (depth - 1, width, 1),
                                    dtype=jnp.float32) * 2 * eps - eps + 1.0)
    act_scale = jax.random.uniform(kc, (depth - 1, width, 1),
                                   dtype=jnp.float32)

    # Host-side folding of activation constants (f64 for a bit of extra care).
    bias64 = np.asarray(act_bias, np.float64)
    slope64 = np.asarray(act_slope, np.float64)
    scale64 = np.asarray(act_scale, np.float64)
    act_a = jnp.asarray(slope64 / scale64, jnp.float32)
    act_b = jnp.asarray(bias64 / scale64, jnp.float32)
    act_s15 = jnp.asarray(1.5 * scale64, jnp.float32)
    act_s05 = jnp.asarray(0.5 * scale64, jnp.float32)

    out = custom_network_forward(
        X, W_layers, act_a, act_b, act_s15, act_s05,
        num_outputs=num_outputs, width_pow=width_pow, depth=depth)
    out = jax.block_until_ready(out)

    ref = reference_forward(
        X, stage_mats_f32, act_bias, act_slope, act_scale,
        num_outputs=num_outputs, width_pow=width_pow,
        depth=depth, bfly_depth=bfly_depth)
    ref = jax.block_until_ready(ref)

    assert out.shape == (num_outputs, batch), out.shape
    # Default (non-HIGHEST) MXU precision for f32 may use bf16 passes; the
    # loosened tolerance still catches any structural error (those are O(1)).
    np.testing.assert_allclose(np.asarray(out), np.asarray(ref),
                               rtol=5e-2, atol=5e-2)
    print("KERNEL_OK")
</pallas_src>

<mosaic_0001>
module attributes {stable_mosaic.version = 11 : i64} {
  func.func @_network_kernel(%arg0: i32, %arg1: memref<32x128xf32, #tpu.memory_space<vmem>>, %arg2: memref<3x32x32xf32, #tpu.memory_space<vmem>>, %arg3: memref<2x32x1xf32, #tpu.memory_space<vmem>>, %arg4: memref<2x32x1xf32, #tpu.memory_space<vmem>>, %arg5: memref<2x32x1xf32, #tpu.memory_space<vmem>>, %arg6: memref<2x32x1xf32, #tpu.memory_space<vmem>>, %arg7: memref<32x128xf32, #tpu.memory_space<vmem>>) attributes {dimension_semantics = [#tpu.dimension_semantics<parallel>], iteration_bounds = array<i64: 2>, scalar_prefetch = 0 : i64, scratch_operands = 0 : i64, tpu.core_type = #tpu.core_type<tc>, window_params = [{transform_indices = @transform_0, window_bounds = array<i64: 32, 128>}, {pipeline_mode = #tpu.pipeline_mode<synchronous>, transform_indices = @transform_1, window_bounds = array<i64: 3, 32, 32>}, {pipeline_mode = #tpu.pipeline_mode<synchronous>, transform_indices = @transform_2, window_bounds = array<i64: 2, 32, 1>}, {pipeline_mode = #tpu.pipeline_mode<synchronous>, transform_indices = @transform_3, window_bounds = array<i64: 2, 32, 1>}, {pipeline_mode = #tpu.pipeline_mode<synchronous>, transform_indices = @transform_4, window_bounds = array<i64: 2, 32, 1>}, {pipeline_mode = #tpu.pipeline_mode<synchronous>, transform_indices = @transform_5, window_bounds = array<i64: 2, 32, 1>}, {transform_indices = @transform_6, window_bounds = array<i64: 32, 128>}]} {
    %c0 = arith.constant 0 : index
    %c0_0 = arith.constant 0 : index
    %0 = vector.load %arg1[%c0, %c0_0] : memref<32x128xf32, #tpu.memory_space<vmem>>, vector<32x128xf32>
    %c0_1 = arith.constant 0 : index
    %c0_2 = arith.constant 0 : index
    %c0_3 = arith.constant 0 : index
    %1 = vector.load %arg2[%c0_1, %c0_2, %c0_3] : memref<3x32x32xf32, #tpu.memory_space<vmem>>, vector<1x32x32xf32>
    %2 = vector.shape_cast %1 : vector<1x32x32xf32> to vector<32x32xf32>
    %cst = arith.constant dense<0.000000e+00> : vector<32x128xf32>
    %3 = tpu.matmul %2, %0, %cst {dimension_numbers = #tpu.dot_dimension_numbers<[1], [0], [0], [1], [0, 0, 1, 1], [], []>} : vector<32x32xf32>, vector<32x128xf32>, vector<32x128xf32> -> vector<32x128xf32>
    %c0_4 = arith.constant 0 : index
    %c0_5 = arith.constant 0 : index
    %c0_6 = arith.constant 0 : index
    %4 = vector.load %arg3[%c0_4, %c0_5, %c0_6] : memref<2x32x1xf32, #tpu.memory_space<vmem>>, vector<1x32x1xf32>
    %5 = vector.shape_cast %4 : vector<1x32x1xf32> to vector<32x1xf32>
    %6 = vector.broadcast %5 : vector<32x1xf32> to vector<32x128xf32>
    %7 = arith.mulf %3, %6 : vector<32x128xf32>
    %c0_7 = arith.constant 0 : index
    %c0_8 = arith.constant 0 : index
    %c0_9 = arith.constant 0 : index
    %8 = vector.load %arg4[%c0_7, %c0_8, %c0_9] : memref<2x32x1xf32, #tpu.memory_space<vmem>>, vector<1x32x1xf32>
    %9 = vector.shape_cast %8 : vector<1x32x1xf32> to vector<32x1xf32>
    %10 = vector.broadcast %9 : vector<32x1xf32> to vector<32x128xf32>
    %11 = arith.subf %7, %10 : vector<32x128xf32>
    %cst_10 = arith.constant -1.000000e+00 : f32
    %cst_11 = arith.constant 1.000000e+00 : f32
    %12 = vector.broadcast %cst_10 : f32 to vector<32x128xf32>
    %13 = arith.maximumf %12, %11 : vector<32x128xf32>
    %14 = vector.broadcast %cst_11 : f32 to vector<32x128xf32>
    %15 = arith.minimumf %14, %13 : vector<32x128xf32>
    %c0_12 = arith.constant 0 : index
    %c0_13 = arith.constant 0 : index
    %c0_14 = arith.constant 0 : index
    %16 = vector.load %arg5[%c0_12, %c0_13, %c0_14] : memref<2x32x1xf32, #tpu.memory_space<vmem>>, vector<1x32x1xf32>
    %17 = vector.shape_cast %16 : vector<1x32x1xf32> to vector<32x1xf32>
    %18 = vector.broadcast %17 : vector<32x1xf32> to vector<32x128xf32>
    %19 = arith.mulf %18, %15 : vector<32x128xf32>
    %c0_15 = arith.constant 0 : index
    %c0_16 = arith.constant 0 : index
    %c0_17 = arith.constant 0 : index
    %20 = vector.load %arg6[%c0_15, %c0_16, %c0_17] : memref<2x32x1xf32, #tpu.memory_space<vmem>>, vector<1x32x1xf32>
    %21 = vector.shape_cast %20 : vector<1x32x1xf32> to vector<32x1xf32>
    %22 = arith.mulf %15, %15 : vector<32x128xf32>
    %23 = arith.mulf %22, %15 : vector<32x128xf32>
    %24 = vector.broadcast %21 : vector<32x1xf32> to vector<32x128xf32>
    %25 = arith.mulf %24, %23 : vector<32x128xf32>
    %26 = arith.subf %19, %25 : vector<32x128xf32>
    %c1 = arith.constant 1 : index
    %c0_18 = arith.constant 0 : index
    %c0_19 = arith.constant 0 : index
    %27 = vector.load %arg2[%c1, %c0_18, %c0_19] : memref<3x32x32xf32, #tpu.memory_space<vmem>>, vector<1x32x32xf32>
    %28 = vector.shape_cast %27 : vector<1x32x32xf32> to vector<32x32xf32>
    %cst_20 = arith.constant dense<0.000000e+00> : vector<32x128xf32>
    %29 = tpu.matmul %28, %26, %cst_20 {dimension_numbers = #tpu.dot_dimension_numbers<[1], [0], [0], [1], [0, 0, 1, 1], [], []>} : vector<32x32xf32>, vector<32x128xf32>, vector<32x128xf32> -> vector<32x128xf32>
    %c1_21 = arith.constant 1 : index
    %c0_22 = arith.constant 0 : index
    %c0_23 = arith.constant 0 : index
    %30 = vector.load %arg3[%c1_21, %c0_22, %c0_23] : memref<2x32x1xf32, #tpu.memory_space<vmem>>, vector<1x32x1xf32>
    %31 = vector.shape_cast %30 : vector<1x32x1xf32> to vector<32x1xf32>
    %32 = vector.broadcast %31 : vector<32x1xf32> to vector<32x128xf32>
    %33 = arith.mulf %29, %32 : vector<32x128xf32>
    %c1_24 = arith.constant 1 : index
    %c0_25 = arith.constant 0 : index
    %c0_26 = arith.constant 0 : index
    %34 = vector.load %arg4[%c1_24, %c0_25, %c0_26] : memref<2x32x1xf32, #tpu.memory_space<vmem>>, vector<1x32x1xf32>
    %35 = vector.shape_cast %34 : vector<1x32x1xf32> to vector<32x1xf32>
    %36 = vector.broadcast %35 : vector<32x1xf32> to vector<32x128xf32>
    %37 = arith.subf %33, %36 : vector<32x128xf32>
    %cst_27 = arith.constant -1.000000e+00 : f32
    %cst_28 = arith.constant 1.000000e+00 : f32
    %38 = vector.broadcast %cst_27 : f32 to vector<32x128xf32>
    %39 = arith.maximumf %38, %37 : vector<32x128xf32>
    %40 = vector.broadcast %cst_28 : f32 to vector<32x128xf32>
    %41 = arith.minimumf %40, %39 : vector<32x128xf32>
    %c1_29 = arith.constant 1 : index
    %c0_30 = arith.constant 0 : index
    %c0_31 = arith.constant 0 : index
    %42 = vector.load %arg5[%c1_29, %c0_30, %c0_31] : memref<2x32x1xf32, #tpu.memory_space<vmem>>, vector<1x32x1xf32>
    %43 = vector.shape_cast %42 : vector<1x32x1xf32> to vector<32x1xf32>
    %44 = vector.broadcast %43 : vector<32x1xf32> to vector<32x128xf32>
    %45 = arith.mulf %44, %41 : vector<32x128xf32>
    %c1_32 = arith.constant 1 : index
    %c0_33 = arith.constant 0 : index
    %c0_34 = arith.constant 0 : index
    %46 = vector.load %arg6[%c1_32, %c0_33, %c0_34] : memref<2x32x1xf32, #tpu.memory_space<vmem>>, vector<1x32x1xf32>
    %47 = vector.shape_cast %46 : vector<1x32x1xf32> to vector<32x1xf32>
    %48 = arith.mulf %41, %41 : vector<32x128xf32>
    %49 = arith.mulf %48, %41 : vector<32x128xf32>
    %50 = vector.broadcast %47 : vector<32x1xf32> to vector<32x128xf32>
    %51 = arith.mulf %50, %49 : vector<32x128xf32>
    %52 = arith.subf %45, %51 : vector<32x128xf32>
    %c2 = arith.constant 2 : index
    %c0_35 = arith.constant 0 : index
    %c0_36 = arith.constant 0 : index
    %53 = vector.load %arg2[%c2, %c0_35, %c0_36] : memref<3x32x32xf32, #tpu.memory_space<vmem>>, vector<1x32x32xf32>
    %54 = vector.shape_cast %53 : vector<1x32x32xf32> to vector<32x32xf32>
    %cst_37 = arith.constant dense<0.000000e+00> : vector<32x128xf32>
    %55 = tpu.matmul %54, %52, %cst_37 {dimension_numbers = #tpu.dot_dimension_numbers<[1], [0], [0], [1], [0, 0, 1, 1], [], []>} : vector<32x32xf32>, vector<32x128xf32>, vector<32x128xf32> -> vector<32x128xf32>
    %c0_38 = arith.constant 0 : index
    %c0_39 = arith.constant 0 : index
    %56 = vector.load %arg7[%c0_38, %c0_39] : memref<32x128xf32, #tpu.memory_space<vmem>>, vector<32x128xf32>
    tpu.vector_store %arg7[%c0_38, %c0_39], %55 {strides = array<i32>} : memref<32x128xf32, #tpu.memory_space<vmem>>, vector<32x128xf32>,
    return
  }
  func.func @transform_0(%arg0: i32) -> (i32, i32) {
    %c0_i32 = arith.constant 0 : i32
    %c0_i32_0 = arith.constant 0 : i32
    return %c0_i32, %arg0 : i32, i32
  }
  func.func @transform_1(%arg0: i32) -> (i32, i32, i32) {
    %c0_i32 = arith.constant 0 : i32
    %c0_i32_0 = arith.constant 0 : i32
    %c0_i32_1 = arith.constant 0 : i32
    %c0_i32_2 = arith.constant 0 : i32
    return %c0_i32, %c0_i32_0, %c0_i32_1 : i32, i32, i32
  }
  func.func @transform_2(%arg0: i32) -> (i32, i32, i32) {
    %c0_i32 = arith.constant 0 : i32
    %c0_i32_0 = arith.constant 0 : i32
    %c0_i32_1 = arith.constant 0 : i32
    %c0_i32_2 = arith.constant 0 : i32
    return %c0_i32, %c0_i32_0, %c0_i32_1 : i32, i32, i32
  }
  func.func @transform_3(%arg0: i32) -> (i32, i32, i32) {
    %c0_i32 = arith.constant 0 : i32
    %c0_i32_0 = arith.constant 0 : i32
    %c0_i32_1 = arith.constant 0 : i32
    %c0_i32_2 = arith.constant 0 : i32
    return %c0_i32, %c0_i32_0, %c0_i32_1 : i32, i32, i32
  }
  func.func @transform_4(%arg0: i32) -> (i32, i32, i32) {
    %c0_i32 = arith.constant 0 : i32
    %c0_i32_0 = arith.constant 0 : i32
    %c0_i32_1 = arith.constant 0 : i32
    %c0_i32_2 = arith.constant 0 : i32
    return %c0_i32, %c0_i32_0, %c0_i32_1 : i32, i32, i32
  }
  func.func @transform_5(%arg0: i32) -> (i32, i32, i32) {
    %c0_i32 = arith.constant 0 : i32
    %c0_i32_0 = arith.constant 0 : i32
    %c0_i32_1 = arith.constant 0 : i32
    %c0_i32_2 = arith.constant 0 : i32
    return %c0_i32, %c0_i32_0, %c0_i32_1 : i32, i32, i32
  }
  func.func @transform_6(%arg0: i32) -> (i32, i32) {
    %c0_i32 = arith.constant 0 : i32
    %c0_i32_0 = arith.constant 0 : i32
    return %c0_i32, %arg0 : i32, i32
  }
}

</mosaic_0001>

<llo_original>
// kernel: tpu_custom_call.1
$region0: #{tpu_custom_call.1}
  #allocation0 [shape = 'u32[]', space=smem, size = 0x4, offset = 0x4, fixed_abs, tag = 'smem constant byte address 0x4 - core index']
  #allocation1 [shape = 'u32[144,128]{1,0:T(1,128)}', space=vmem, size = 0x12000, scoped, tag = 'internal scratch']
  %s0 = inlined_call_operand.vmem [shape: f32[32,256], index: 0, kind: input, shape index: {}]
  %s1 = inlined_call_operand.vmem [shape: f32[3,32,32], index: 1, kind: input, shape index: {}]
  %s2 = inlined_call_operand.vmem [shape: f32[2,32,1], index: 2, kind: input, shape index: {}]
  %s3 = inlined_call_operand.vmem [shape: f32[2,32,1], index: 3, kind: input, shape index: {}]
  %s4 = inlined_call_operand.vmem [shape: f32[2,32,1], index: 4, kind: input, shape index: {}]
  %s5 = inlined_call_operand.vmem [shape: f32[2,32,1], index: 5, kind: input, shape index: {}]
  %s6 = inlined_call_operand.hbm [shape: f32[32,256], index: 6, kind: output, shape index: {}]
  %s7 = sld [smem:[#allocation0]]
  $region95: #{tpu_custom_call.1} parent=0
    _
  %s9 = ssub.s32 1, %s7
  %s10 = scalar_select 0, %s9, %s7
  $region1: #{tpu_custom_call.1} parent=0
    #allocation2 [shape = 'u8[32768]{0}', space=vmem, size = 0x8000, scoped, tag = 'input window, operand 0']
    #allocation3 [shape = 'u8[32768]{0}', space=vmem, size = 0x8000, scoped, tag = 'output window, operand 0']
    #allocation4 [shape = 's32[2]{0}', space=sflag, size = 0x8, scoped, tag = 'scoped memory for tpu_custom_call.1']
    %11 = vsyncpa [#allocation4], 0
    %s12 = scalar_lea.sflag [#allocation4], 1
    %13 = vsyncpa %s12, 0
    loop: start=0, step=1, limit=4
    $region2: #{tpu_custom_call.1} parent=1 // loop_pre_header
      _
    $region3: #{tpu_custom_call.1} parent=1 // loop_header
      %s15 = sphi 0, %s19
      %p16 = scmp.ge.s32.totalorder %s15, 4
      %s25 = sphi 0, %s27
      %s28 = sphi 0, %s25
      %s29 = sphi 0, %s28
      %s45 = sphi 0, %s29
      %s49 = sphi 0, %s49
      %s51 = sphi 0, %s49
      %s52 = sphi 0, %s51
      %s66 = sphi 0, %s52
      %s70 = sphi 0, %s70
      %s72 = sphi 0, %s70
      %s73 = sphi 0, %s72
      %s87 = sphi 0, %s73
      %s91 = sphi 0, %s91
      %s93 = sphi 0, %s91
      %s94 = sphi 0, %s93
      %s108 = sphi 0, %s94
      %s112 = sphi 0, %s112
      %s114 = sphi 0, %s112
      %s115 = sphi 0, %s114
      %s129 = sphi 0, %s115
      %s133 = sphi 0, %s133
      %s135 = sphi 0, %s133
      %s136 = sphi 0, %s135
      %s150 = sphi 0, %s136
      %s156 = sphi 0, %s158
      %s159 = sphi 0, %s156
      %s160 = sphi 0, %s159
      %s176 = sphi 0, %s160
    $region4: #{tpu_custom_call.1} parent=1 // loop_header_branch
      %18 = sbr.rel (%p16) target = $region8
    $region5: #{tpu_custom_call.1} parent=1 // loop_body
      %s20 = ssub.s32 %s15, 1
      %s21 = ssub.s32 %s15, 2
      %s22 = sadd.s32 %s15, 1
      %s23 = ssub.s32 %s15, %s22
      %p24 = scmp.eq.s32.totalorder %s23, 0
      %s26 = sadd.s32 %s25, 1
      %s27 = scalar_select %p24, %s25, %s26
      %p30 = pneg %p24
      %p31 = scmp.eq.s32.totalorder %s15, 1
      %p32 = por %p30, %p31
      %p33 = scmp.ne.s32.totalorder %s25, %s28
      %p34 = scmp.eq.s32.totalorder %s15, 0
      %p35 = por %p33, %p34
      %p36 = scmp.ne.s32.totalorder %s25, %s28
      %p37 = scmp.eq.s32.totalorder %s20, 1
      %p38 = por %p36, %p37
      %p39 = scmp.ne.s32.totalorder %s28, %s29
      %p40 = scmp.eq.s32.totalorder %s20, 0
      %p41 = por %p39, %p40
      %p42 = scmp.ne.s32.totalorder %s28, %s29
      %p43 = scmp.eq.s32.totalorder %s21, 1
      %p44 = por %p42, %p43
      %p46 = scmp.ne.s32.totalorder %s29, %s45
      %p47 = scmp.eq.s32.totalorder %s21, 0
      %p48 = por %p46, %p47
      %s50 = sadd.s32 %s49, 1
      %p53 = scmp.eq.s32.totalorder %s15, 1
      %p54 = scmp.ne.s32.totalorder %s49, %s51
      %p55 = scmp.eq.s32.totalorder %s15, 0
      %p56 = por %p54, %p55
      %p57 = scmp.ne.s32.totalorder %s49, %s51
      %p58 = scmp.eq.s32.totalorder %s20, 1
      %p59 = por %p57, %p58
      %p60 = scmp.ne.s32.totalorder %s51, %s52
      %p61 = scmp.eq.s32.totalorder %s20, 0
      %p62 = por %p60, %p61
      %p63 = scmp.ne.s32.totalorder %s51, %s52
      %p64 = scmp.eq.s32.totalorder %s21, 1
      %p65 = por %p63, %p64
      %p67 = scmp.ne.s32.totalorder %s52, %s66
      %p68 = scmp.eq.s32.totalorder %s21, 0
      %p69 = por %p67, %p68
      %s71 = sadd.s32 %s70, 1
      %p74 = scmp.eq.s32.totalorder %s15, 1
      %p75 = scmp.ne.s32.totalorder %s70, %s72
      %p76 = scmp.eq.s32.totalorder %s15, 0
      %p77 = por %p75, %p76
      %p78 = scmp.ne.s32.totalorder %s70, %s72
      %p79 = scmp.eq.s32.totalorder %s20, 1
      %p80 = por %p78, %p79
      %p81 = scmp.ne.s32.totalorder %s72, %s73
      %p82 = scmp.eq.s32.totalorder %s20, 0
      %p83 = por %p81, %p82
      %p84 = scmp.ne.s32.totalorder %s72, %s73
      %p85 = scmp.eq.s32.totalorder %s21, 1
      %p86 = por %p84, %p85
      %p88 = scmp.ne.s32.totalorder %s73, %s87
      %p89 = scmp.eq.s32.totalorder %s21, 0
      %p90 = por %p88, %p89
      %s92 = sadd.s32 %s91, 1
      %p95 = scmp.eq.s32.totalorder %s15, 1
      %p96 = scmp.ne.s32.totalorder %s91, %s93
      %p97 = scmp.eq.s32.totalorder %s15, 0
      %p98 = por %p96, %p97
      %p99 = scmp.ne.s32.totalorder %s91, %s93
      %p100 = scmp.eq.s32.totalorder %s20, 1
      %p101 = por %p99, %p100
      %p102 = scmp.ne.s32.totalorder %s93, %s94
      %p103 = scmp.eq.s32.totalorder %s20, 0
      %p104 = por %p102, %p103
      %p105 = scmp.ne.s32.totalorder %s93, %s94
      %p106 = scmp.eq.s32.totalorder %s21, 1
      %p107 = por %p105, %p106
      %p109 = scmp.ne.s32.totalorder %s94, %s108
      %p110 = scmp.eq.s32.totalorder %s21, 0
      %p111 = por %p109, %p110
      %s113 = sadd.s32 %s112, 1
      %p116 = scmp.eq.s32.totalorder %s15, 1
      %p117 = scmp.ne.s32.totalorder %s112, %s114
      %p118 = scmp.eq.s32.totalorder %s15, 0
      %p119 = por %p117, %p118
      %p120 = scmp.ne.s32.totalorder %s112, %s114
      %p121 = scmp.eq.s32.totalorder %s20, 1
      %p122 = por %p120, %p121
      %p123 = scmp.ne.s32.totalorder %s114, %s115
      %p124 = scmp.eq.s32.totalorder %s20, 0
      %p125 = por %p123, %p124
      %p126 = scmp.ne.s32.totalorder %s114, %s115
      %p127 = scmp.eq.s32.totalorder %s21, 1
      %p128 = por %p126, %p127
      %p130 = scmp.ne.s32.totalorder %s115, %s129
      %p131 = scmp.eq.s32.totalorder %s21, 0
      %p132 = por %p130, %p131
      %s134 = sadd.s32 %s133, 1
      %p137 = scmp.eq.s32.totalorder %s15, 1
      %p138 = scmp.ne.s32.totalorder %s133, %s135
      %p139 = scmp.eq.s32.totalorder %s15, 0
      %p140 = por %p138, %p139
      %p141 = scmp.ne.s32.totalorder %s133, %s135
      %p142 = scmp.eq.s32.totalorder %s20, 1
      %p143 = por %p141, %p142
      %p144 = scmp.ne.s32.totalorder %s135, %s136
      %p145 = scmp.eq.s32.totalorder %s20, 0
      %p146 = por %p144, %p145
      %p147 = scmp.ne.s32.totalorder %s135, %s136
      %p148 = scmp.eq.s32.totalorder %s21, 1
      %p149 = por %p147, %p148
      %p151 = scmp.ne.s32.totalorder %s136, %s150
      %p152 = scmp.eq.s32.totalorder %s21, 0
      %p153 = por %p151, %p152
      %s154 = ssub.s32 %s15, %s22
      %p155 = scmp.eq.s32.totalorder %s154, 0
      %s157 = sadd.s32 %s156, 1
      %s158 = scalar_select %p155, %s156, %s157
      %p161 = pneg %p155
      %p162 = scmp.eq.s32.totalorder %s15, 1
      %p163 = por %p161, %p162
      %p164 = scmp.ne.s32.totalorder %s156, %s159
      %p165 = scmp.eq.s32.totalorder %s15, 0
      %p166 = por %p164, %p165
      %p167 = scmp.ne.s32.totalorder %s156, %s159
      %p168 = scmp.eq.s32.totalorder %s20, 1
      %p169 = por %p167, %p168
      %p170 = scmp.ne.s32.totalorder %s159, %s160
      %p171 = scmp.eq.s32.totalorder %s20, 0
      %p172 = por %p170, %p171
      %p173 = scmp.ne.s32.totalorder %s159, %s160
      %p174 = scmp.eq.s32.totalorder %s21, 1
      %p175 = por %p173, %p174
      %p177 = scmp.ne.s32.totalorder %s160, %s176
      %p178 = scmp.eq.s32.totalorder %s21, 0
      %p179 = por %p177, %p178
      %p180 = scmp.le.s32.totalorder 1, %s15
      %p181 = scmp.lt.s32.totalorder %s15, 3
      %p182 = pnand %p180, %p181
      %p183 = pneg %p182
      // Predicated region
      $region9: #{tpu_custom_call.1} parent=5 // pred_check
        _
      $region10: #{tpu_custom_call.1} parent=5 // pred_check_branch
        %185 = sbr.rel (%p182) target = $region12
      $region11: #{tpu_custom_call.1} parent=5 // pred_region
        %s186 = ssub.s32 %s15, 1
        // Predicated region
        $region13: #{tpu_custom_call.1} parent=11 // pred_check
          %p187 = pneg %p62
        $region14: #{tpu_custom_call.1} parent=11 // pred_check_branch
          %189 = sbr.rel (%p187) target = $region16
        $region15: #{tpu_custom_call.1} parent=11 // pred_region
          _
        $region16: #{tpu_custom_call.1} parent=11 // pred_fallthru
          _
        // Predicated region
        $region17: #{tpu_custom_call.1} parent=11 // pred_check
          %p190 = pneg %p83
        $region18: #{tpu_custom_call.1} parent=11 // pred_check_branch
          %192 = sbr.rel (%p190) target = $region20
        $region19: #{tpu_custom_call.1} parent=11 // pred_region
          _
        $region20: #{tpu_custom_call.1} parent=11 // pred_fallthru
          _
        // Predicated region
        $region21: #{tpu_custom_call.1} parent=11 // pred_check
          %p193 = pneg %p104
        $region22: #{tpu_custom_call.1} parent=11 // pred_check_branch
          %195 = sbr.rel (%p193) target = $region24
        $region23: #{tpu_custom_call.1} parent=11 // pred_region
          _
        $region24: #{tpu_custom_call.1} parent=11 // pred_fallthru
          _
        // Predicated region
        $region25: #{tpu_custom_call.1} parent=11 // pred_check
          %p196 = pneg %p125
        $region26: #{tpu_custom_call.1} parent=11 // pred_check_branch
          %198 = sbr.rel (%p196) target = $region28
        $region27: #{tpu_custom_call.1} parent=11 // pred_region
          _
        $region28: #{tpu_custom_call.1} parent=11 // pred_fallthru
          _
        // Predicated region
        $region29: #{tpu_custom_call.1} parent=11 // pred_check
          %p199 = pneg %p146
        $region30: #{tpu_custom_call.1} parent=11 // pred_check_branch
          %201 = sbr.rel (%p199) target = $region32
        $region31: #{tpu_custom_call.1} parent=11 // pred_region
          _
        $region32: #{tpu_custom_call.1} parent=11 // pred_fallthru
          _
      $region12: #{tpu_custom_call.1} parent=5 // pred_fallthru
        _
      %p202 = scmp.lt.s32.totalorder %s15, 2
      // Predicated region
      $region33: #{tpu_custom_call.1} parent=5 // pred_check
        %p203 = pneg %p202
      $region34: #{tpu_custom_call.1} parent=5 // pred_check_branch
        %205 = sbr.rel (%p203) target = $region36
      $region35: #{tpu_custom_call.1} parent=5 // pred_region
        // Predicated region
        $region37: #{tpu_custom_call.1} parent=35 // pred_check
          %p206 = pneg %p35
        $region38: #{tpu_custom_call.1} parent=35 // pred_check_branch
          %208 = sbr.rel (%p206) target = $region40
        $region39: #{tpu_custom_call.1} parent=35 // pred_region
          %s209 = sand.u32 %s25, 1
          %s210 = sand.u32 %s25, 1
          %s211 = smul.addr %s210, 32
          %s212 = scalar_lea.vmem [#allocation2], %s211
          %s213 = smul.addr %s15, 8
          %s214 = scalar_lea.vmem %s0, %s213
          // Predicated region
          $region41: #{tpu_custom_call.1} parent=39 // pred_check
            _
          $region42: #{tpu_custom_call.1} parent=39 // pred_check_branch
            %216 = sbr.rel (0) target = $region44
          $region43: #{tpu_custom_call.1} parent=39 // pred_region
            // Predicated region
            $region45: #{tpu_custom_call.1} parent=43 // pred_check
              _
            $region46: #{tpu_custom_call.1} parent=43 // pred_check_branch
              %218 = sbr.rel (0) target = $region48
            $region47: #{tpu_custom_call.1} parent=43 // pred_region
              // Predicated region
              $region60: #{tpu_custom_call.1} parent=47 // pred_check
                _
              $region61: #{tpu_custom_call.1} parent=47 // pred_check_branch
                %240 = sbr.rel (0) target = $region63
              $region62: #{tpu_custom_call.1} parent=47 // pred_region
                loop: start=0, step=1, limit=1
                $region64: #{tpu_custom_call.1} parent=62 // loop_pre_header
                  _
                $region65: #{tpu_custom_call.1} parent=62 // loop_header
                  %s242 = sphi 0, %s246
                  %p243 = scmp.ge.s32.totalorder %s242, 1
                  %s247 = sphi %s214, %s214
                  %s248 = sphi %s212, %s212
                $region66: #{tpu_custom_call.1} parent=62 // loop_header_branch
                  %245 = sbr.rel (%p243) target = $region70
                $region67: #{tpu_custom_call.1} parent=62 // loop_body
                  %v249 = vld [vmem:[%s247] sm:$0xff]
                  %250 = vst [vmem:[%s248] sm:$0xff] %v249
                  %v251 = vld [vmem:[%s247 + $0x10] sm:$0xff]
                  %252 = vst [vmem:[%s248 + $0x8] sm:$0xff] %v251
                  %v253 = vld [vmem:[%s247 + $0x20] sm:$0xff]
                  %254 = vst [vmem:[%s248 + $0x10] sm:$0xff] %v253
                  %v255 = vld [vmem:[%s247 + $0x30] sm:$0xff]
                  %256 = vst [vmem:[%s248 + $0x18] sm:$0xff] %v255
                $region68: #{tpu_custom_call.1} parent=62 // loop_footer
                  %s246 = sadd.s32 1, %s242
                $region69: #{tpu_custom_call.1} parent=62 // loop_footer_branch
                  %241 = sbr.rel target = $region65
                $region70: #{tpu_custom_call.1} parent=62 // loop_exit
                  _
              $region63: #{tpu_custom_call.1} parent=47 // pred_fallthru
                _
              // Predicated region
              $region71: #{tpu_custom_call.1} parent=47 // pred_check
                _
              $region72: #{tpu_custom_call.1} parent=47 // pred_check_branch
                %258 = sbr.rel target = $region74
              $region73: #{tpu_custom_call.1} parent=47 // pred_region
                _
              $region74: #{tpu_custom_call.1} parent=47 // pred_fallthru
                _
            $region48: #{tpu_custom_call.1} parent=43 // pred_fallthru
              _
            // Predicated region
            $region49: #{tpu_custom_call.1} parent=43 // pred_check
              _
            $region50: #{tpu_custom_call.1} parent=43 // pred_check_branch
              %220 = sbr.rel target = $region52
            $region51: #{tpu_custom_call.1} parent=43 // pred_region
              %s222 = ssub.s32 256, 1
              loop: start=0, step=1, limit=1
              $region53: #{tpu_custom_call.1} parent=51 // loop_pre_header
                _
              $region54: #{tpu_custom_call.1} parent=51 // loop_header
                %s224 = sphi 0, %s228
                %p225 = scmp.ge.s32.totalorder %s224, 1
                %s229 = sphi %s214, %s214
                %s230 = sphi %s212, %s212
              $region55: #{tpu_custom_call.1} parent=51 // loop_header_branch
                %227 = sbr.rel (%p225) target = $region59
              $region56: #{tpu_custom_call.1} parent=51 // loop_body
                %v231 = vld [vmem:[%s229] sm:%s222]
                %232 = vst [vmem:[%s230] sm:%s222] %v231
                %v233 = vld [vmem:[%s229 + $0x10] sm:%s222]
                %234 = vst [vmem:[%s230 + $0x8] sm:%s222] %v233
                %v235 = vld [vmem:[%s229 + $0x20] sm:%s222]
                %236 = vst [vmem:[%s230 + $0x10] sm:%s222] %v235
                %v237 = vld [vmem:[%s229 + $0x30] sm:%s222]
                %238 = vst [vmem:[%s230 + $0x18] sm:%s222] %v237
              $region57: #{tpu_custom_call.1} parent=51 // loop_footer
                %s228 = sadd.s32 1, %s224
              $region58: #{tpu_custom_call.1} parent=51 // loop_footer_branch
                %223 = sbr.rel target = $region54
              $region59: #{tpu_custom_call.1} parent=51 // loop_exit
                _
            $region52: #{tpu_custom_call.1} parent=43 // pred_fallthru
              _
          $region44: #{tpu_custom_call.1} parent=39 // pred_fallthru
            _
          %259 = vnop
        $region40: #{tpu_custom_call.1} parent=35 // pred_fallthru
          _
      $region36: #{tpu_custom_call.1} parent=5 // pred_fallthru
        _
      %p260 = scmp.le.s32.totalorder 1, %s15
      %p261 = scmp.lt.s32.totalorder %s15, 3
      %p262 = pnand %p260, %p261
      %p263 = pneg %p262
      // Predicated region
      $region75: #{tpu_custom_call.1} parent=5 // pred_check
        _
      $region76: #{tpu_custom_call.1} parent=5 // pred_check_branch
        %265 = sbr.rel (%p262) target = $region78
      $region77: #{tpu_custom_call.1} parent=5 // pred_region
        %s266 = ssub.s32 %s15, 1
        %s267 = sand.u32 %s28, 1
        %s268 = sand.u32 %s28, 1
        %s269 = smul.addr %s268, 32
        %s270 = scalar_lea.vmem [#allocation2], %s269
        // Predicated region
        $region79: #{tpu_custom_call.1} parent=77 // pred_check
          %p271 = pneg %p41
        $region80: #{tpu_custom_call.1} parent=77 // pred_check_branch
          %273 = sbr.rel (%p271) target = $region82
        $region81: #{tpu_custom_call.1} parent=77 // pred_region
          _
        $region82: #{tpu_custom_call.1} parent=77 // pred_fallthru
          _
        %s274 = sand.u32 %s28, 1
        %s275 = sand.u32 %s28, 1
        %s276 = smul.addr %s275, 32
        %s277 = scalar_lea.vmem [#allocation2], %s276
        %p278 = pneg %p41
        %p279 = pneg %p38
        %p280 = pneg %p62
        %p281 = pneg %p59
        %p282 = pneg %p83
        %p283 = pneg %p80
        %p284 = pneg %p104
        %p285 = pneg %p101
        %p286 = pneg %p125
        %p287 = pneg %p122
        %p288 = pneg %p146
        %p289 = pneg %p143
        %p290 = pneg %p172
        %p291 = pneg %p169
        %s292 = sand.u32 %s159, 1
        %s293 = scalar_lea.sflag [#allocation4], %s292
        %s294 = sand.u32 %s159, 1
        %s295 = smul.addr %s294, 32
        %s296 = scalar_lea.vmem [#allocation3], %s295
        %v297 = vld [vmem:[%s270] sm:$0xff]
        %v298 = vld [vmem:[%s270 + $0x8] sm:$0xff]
        %v299 = vld [vmem:[%s270 + $0x10] sm:$0xff]
        %v300 = vld [vmem:[%s270 + $0x18] sm:$0xff]
        %v301 = vld [vmem:[%s1] sm:$0xff]
        %v302 = vld [vmem:[%s1 + $0x8] sm:$0xff]
        %v303 = vld [vmem:[%s1 + $0x10] sm:$0xff]
        %v304 = vld [vmem:[%s1 + $0x18] sm:$0xff]
        %vm305 = vcmask 261120
        %v307 = vsel %vm305, %v301, 0
        %v310 = vsel %vm305, %v302, 0
        %v313 = vsel %vm305, %v303, 0
        %v316 = vsel %vm305, %v304, 0
        %318 = vmatprep.subr.mxu0 0.0
        %319 = vmatpush1.msra.mxu0 0.0
        %320 = vmatprep.subr.mxu0 0.0
        %321 = vmatpush1.msra.mxu0 0.0
        %322 = vmatprep.subr.mxu0 0.0
        %323 = vmatpush1.msra.mxu0 0.0
        %324 = vmatprep.subr.mxu0 0.0
        %325 = vmatpush1.msra.mxu0 0.0
        %326 = vmatprep.subr.mxu0 0.0
        %327 = vmatpush1.msra.mxu0 0.0
        %328 = vmatprep.subr.mxu0 0.0
        %329 = vmatpush1.msra.mxu0 0.0
        %330 = vmatprep.subr.mxu0 0.0
        %331 = vmatpush1.msra.mxu0 0.0
        %332 = vmatprep.subr.mxu0 0.0
        %333 = vmatpush1.msra.mxu0 0.0
        %334 = vmatprep.subr.mxu0 0.0
        %335 = vmatpush1.msra.mxu0 0.0
        %336 = vmatprep.subr.mxu0 0.0
        %337 = vmatpush1.msra.mxu0 0.0
        %338 = vmatprep.subr.mxu0 0.0
        %339 = vmatpush1.msra.mxu0 0.0
        %340 = vmatprep.subr.mxu0 0.0
        %341 = vmatpush1.msra.mxu0 0.0
        %342 = vmatprep.subr.mxu0 0.0
        %343 = vmatpush1.msra.mxu0 %v300
        %344 = vmatprep.subr.mxu0 0.0
        %345 = vmatpush1.msra.mxu0 %v299
        %346 = vmatprep.subr.mxu0 0.0
        %347 = vmatpush1.msra.mxu0 %v298
        %348 = vmatprep.subr.mxu0 0.0
        %349 = vmatpush1.msra.mxu0 %v297
        %350 = vmatprep.subr.mxu0 0.0
        %351 = vmatpush2.msra.mxu0 0.0
        %352 = vmatprep.subr.mxu0 0.0
        %353 = vmatpush2.msra.mxu0 0.0
        %354 = vmatprep.subr.mxu0 0.0
        %355 = vmatpush2.msra.mxu0 0.0
        %356 = vmatprep.subr.mxu0 0.0
        %357 = vmatpush2.msra.mxu0 0.0
        %358 = vmatprep.subr.mxu0 0.0
        %359 = vmatpush2.msra.mxu0 0.0
        %360 = vmatprep.subr.mxu0 0.0
        %361 = vmatpush2.msra.mxu0 0.0
        %362 = vmatprep.subr.mxu0 0.0
        %363 = vmatpush2.msra.mxu0 0.0
        %364 = vmatprep.subr.mxu0 0.0
        %365 = vmatpush2.msra.mxu0 0.0
        %366 = vmatprep.subr.mxu0 0.0
        %367 = vmatpush2.msra.mxu0 0.0
        %368 = vmatprep.subr.mxu0 0.0
        %369 = vmatpush2.msra.mxu0 0.0
        %370 = vmatprep.subr.mxu0 0.0
        %371 = vmatpush2.msra.mxu0 0.0
        %372 = vmatprep.subr.mxu0 0.0
        %373 = vmatpush2.msra.mxu0 0.0
        %374 = vmatprep.subr.mxu0 0.0
        %375 = vmatpush2.msra.mxu0 0.0
        %376 = vmatprep.subr.mxu0 0.0
        %377 = vmatpush2.msra.mxu0 0.0
        %378 = vmatprep.subr.mxu0 0.0
        %379 = vmatpush2.msra.mxu0 0.0
        %380 = vmatprep.subr.mxu0 0.0
        %381 = vmatpush2.msra.mxu0 0.0
        %382 = vmatprep.mubr.f32.mxu0 0.0
        %383 = vmatmul.mubr.f32.gmra.mxu0 %v307
        %v384 = vpop.f32.mrf.mxu0
        %v385 = vadd.f32 0.0, %v384
        %v386 = vpop.f32.mrf.mxu0
        %387 = vmatprep.mubr.f32.mxu0 0.0
        %388 = vmatmul.mubr.f32.gmra.mxu0 %v310
        %v389 = vpop.f32.mrf.mxu0
        %v390 = vadd.f32 0.0, %v389
        %v391 = vpop.f32.mrf.mxu0
        %392 = vmatprep.mubr.f32.mxu0 0.0
        %393 = vmatmul.mubr.f32.gmra.mxu0 %v313
        %v394 = vpop.f32.mrf.mxu0
        %v395 = vadd.f32 0.0, %v394
        %v396 = vpop.f32.mrf.mxu0
        %397 = vmatprep.mubr.f32.mxu0 0.0
        %398 = vmatmul.mubr.f32.gmra.mxu0 %v316
        %v399 = vpop.f32.mrf.mxu0
        %v400 = vadd.f32 0.0, %v399
        %v401 = vpop.f32.mrf.mxu0
        %402 = vdwg.mxu0
        %v403 = vld [vmem:[%s2] sm:$0xff]
        %v404 = vld [vmem:[%s2 + $0x8] sm:$0xff]
        %v405 = vld [vmem:[%s2 + $0x10] sm:$0xff]
        %v406 = vld [vmem:[%s2 + $0x18] sm:$0xff]
        %408 = vset.pattern.permute.xlu0 0
        %409 = vperm.xlu0 %408, %v403
        %v410 = vpop.permute.xlu0 %409
        %413 = vset.pattern.permute.xlu0 0
        %414 = vperm.xlu0 %413, %v404
        %v415 = vpop.permute.xlu0 %414
        %418 = vset.pattern.permute.xlu0 0
        %419 = vperm.xlu0 %418, %v405
        %v420 = vpop.permute.xlu0 %419
        %423 = vset.pattern.permute.xlu0 0
        %424 = vperm.xlu0 %423, %v406
        %v425 = vpop.permute.xlu0 %424
        %v427 = vmul.f32 %v385, %v410
        %v428 = vmul.f32 %v390, %v415
        %v429 = vmul.f32 %v395, %v420
        %v430 = vmul.f32 %v400, %v425
        %v431 = vld [vmem:[%s3] sm:$0xff]
        %v432 = vld [vmem:[%s3 + $0x8] sm:$0xff]
        %v433 = vld [vmem:[%s3 + $0x10] sm:$0xff]
        %v434 = vld [vmem:[%s3 + $0x18] sm:$0xff]
        %436 = vset.pattern.permute.xlu0 0
        %437 = vperm.xlu0 %436, %v431
        %v438 = vpop.permute.xlu0 %437
        %441 = vset.pattern.permute.xlu0 0
        %442 = vperm.xlu0 %441, %v432
        %v443 = vpop.permute.xlu0 %442
        %446 = vset.pattern.permute.xlu0 0
        %447 = vperm.xlu0 %446, %v433
        %v448 = vpop.permute.xlu0 %447
        %451 = vset.pattern.permute.xlu0 0
        %452 = vperm.xlu0 %451, %v434
        %v453 = vpop.permute.xlu0 %452
        %v455 = vsub.f32 %v427, %v438
        %v456 = vsub.f32 %v428, %v443
        %v457 = vsub.f32 %v429, %v448
        %v458 = vsub.f32 %v430, %v453
        %v459 = vmax.f32 %v455, -1.0
        %v460 = vmax.f32 %v456, -1.0
        %v461 = vmax.f32 %v457, -1.0
        %v462 = vmax.f32 %v458, -1.0
        %v463 = vmin.f32 %v459, 1.0
        %v464 = vmin.f32 %v460, 1.0
        %v465 = vmin.f32 %v461, 1.0
        %v466 = vmin.f32 %v462, 1.0
        %v467 = vld [vmem:[%s4] sm:$0xff]
        %v468 = vld [vmem:[%s4 + $0x8] sm:$0xff]
        %v469 = vld [vmem:[%s4 + $0x10] sm:$0xff]
        %v470 = vld [vmem:[%s4 + $0x18] sm:$0xff]
        %472 = vset.pattern.permute.xlu0 0
        %473 = vperm.xlu0 %472, %v467
        %v474 = vpop.permute.xlu0 %473
        %477 = vset.pattern.permute.xlu0 0
        %478 = vperm.xlu0 %477, %v468
        %v479 = vpop.permute.xlu0 %478
        %482 = vset.pattern.permute.xlu0 0
        %483 = vperm.xlu0 %482, %v469
        %v484 = vpop.permute.xlu0 %483
        %487 = vset.pattern.permute.xlu0 0
        %488 = vperm.xlu0 %487, %v470
        %v489 = vpop.permute.xlu0 %488
        %v491 = vmul.f32 %v474, %v463
        %v492 = vmul.f32 %v479, %v464
        %v493 = vmul.f32 %v484, %v465
        %v494 = vmul.f32 %v489, %v466
        %v495 = vld [vmem:[%s5] sm:$0xff]
        %v496 = vld [vmem:[%s5 + $0x8] sm:$0xff]
        %v497 = vld [vmem:[%s5 + $0x10] sm:$0xff]
        %v498 = vld [vmem:[%s5 + $0x18] sm:$0xff]
        %v499 = vmul.f32 %v463, %v463
        %v500 = vmul.f32 %v464, %v464
        %v501 = vmul.f32 %v465, %v465
        %v502 = vmul.f32 %v466, %v466
        %v503 = vmul.f32 %v499, %v463
        %v504 = vmul.f32 %v500, %v464
        %v505 = vmul.f32 %v501, %v465
        %v506 = vmul.f32 %v502, %v466
        %508 = vset.pattern.permute.xlu0 0
        %509 = vperm.xlu0 %508, %v495
        %v510 = vpop.permute.xlu0 %509
        %513 = vset.pattern.permute.xlu0 0
        %514 = vperm.xlu0 %513, %v496
        %v515 = vpop.permute.xlu0 %514
        %518 = vset.pattern.permute.xlu0 0
        %519 = vperm.xlu0 %518, %v497
        %v520 = vpop.permute.xlu0 %519
        %523 = vset.pattern.permute.xlu0 0
        %524 = vperm.xlu0 %523, %v498
        %v525 = vpop.permute.xlu0 %524
        %v527 = vmul.f32 %v510, %v503
        %v528 = vmul.f32 %v515, %v504
        %v529 = vmul.f32 %v520, %v505
        %v530 = vmul.f32 %v525, %v506
        %v531 = vsub.f32 %v491, %v527
        %v532 = vsub.f32 %v492, %v528
        %v533 = vsub.f32 %v493, %v529
        %v534 = vsub.f32 %v494, %v530
        %s535 = scalar_lea.vmem %s1, 32
        %v536 = vld [vmem:[%s535] sm:$0xff]
        %v537 = vld [vmem:[%s535 + $0x8] sm:$0xff]
        %v538 = vld [vmem:[%s535 + $0x10] sm:$0xff]
        %v539 = vld [vmem:[%s535 + $0x18] sm:$0xff]
        %v541 = vsel %vm305, %v536, 0
        %v544 = vsel %vm305, %v537, 0
        %v547 = vsel %vm305, %v538, 0
        %v550 = vsel %vm305, %v539, 0
        %552 = vmatprep.subr.mxu0 0.0
        %553 = vmatpush1.msra.mxu0 0.0
        %554 = vmatprep.subr.mxu0 0.0
        %555 = vmatpush1.msra.mxu0 0.0
        %556 = vmatprep.subr.mxu0 0.0
        %557 = vmatpush1.msra.mxu0 0.0
        %558 = vmatprep.subr.mxu0 0.0
        %559 = vmatpush1.msra.mxu0 0.0
        %560 = vmatprep.subr.mxu0 0.0
        %561 = vmatpush1.msra.mxu0 0.0
        %562 = vmatprep.subr.mxu0 0.0
        %563 = vmatpush1.msra.mxu0 0.0
        %564 = vmatprep.subr.mxu0 0.0
        %565 = vmatpush1.msra.mxu0 0.0
        %566 = vmatprep.subr.mxu0 0.0
        %567 = vmatpush1.msra.mxu0 0.0
        %568 = vmatprep.subr.mxu0 0.0
        %569 = vmatpush1.msra.mxu0 0.0
        %570 = vmatprep.subr.mxu0 0.0
        %571 = vmatpush1.msra.mxu0 0.0
        %572 = vmatprep.subr.mxu0 0.0
        %573 = vmatpush1.msra.mxu0 0.0
        %574 = vmatprep.subr.mxu0 0.0
        %575 = vmatpush1.msra.mxu0 0.0
        %576 = vmatprep.subr.mxu0 0.0
        %577 = vmatpush1.msra.mxu0 %v534
        %578 = vmatprep.subr.mxu0 0.0
        %579 = vmatpush1.msra.mxu0 %v533
        %580 = vmatprep.subr.mxu0 0.0
        %581 = vmatpush1.msra.mxu0 %v532
        %582 = vmatprep.subr.mxu0 0.0
        %583 = vmatpush1.msra.mxu0 %v531
        %584 = vmatprep.subr.mxu0 0.0
        %585 = vmatpush2.msra.mxu0 0.0
        %586 = vmatprep.subr.mxu0 0.0
        %587 = vmatpush2.msra.mxu0 0.0
        %588 = vmatprep.subr.mxu0 0.0
        %589 = vmatpush2.msra.mxu0 0.0
        %590 = vmatprep.subr.mxu0 0.0
        %591 = vmatpush2.msra.mxu0 0.0
        %592 = vmatprep.subr.mxu0 0.0
        %593 = vmatpush2.msra.mxu0 0.0
        %594 = vmatprep.subr.mxu0 0.0
        %595 = vmatpush2.msra.mxu0 0.0
        %596 = vmatprep.subr.mxu0 0.0
        %597 = vmatpush2.msra.mxu0 0.0
        %598 = vmatprep.subr.mxu0 0.0
        %599 = vmatpush2.msra.mxu0 0.0
        %600 = vmatprep.subr.mxu0 0.0
        %601 = vmatpush2.msra.mxu0 0.0
        %602 = vmatprep.subr.mxu0 0.0
        %603 = vmatpush2.msra.mxu0 0.0
        %604 = vmatprep.subr.mxu0 0.0
        %605 = vmatpush2.msra.mxu0 0.0
        %606 = vmatprep.subr.mxu0 0.0
        %607 = vmatpush2.msra.mxu0 0.0
        %608 = vmatprep.subr.mxu0 0.0
        %609 = vmatpush2.msra.mxu0 0.0
        %610 = vmatprep.subr.mxu0 0.0
        %611 = vmatpush2.msra.mxu0 0.0
        %612 = vmatprep.subr.mxu0 0.0
        %613 = vmatpush2.msra.mxu0 0.0
        %614 = vmatprep.subr.mxu0 0.0
        %615 = vmatpush2.msra.mxu0 0.0
        %616 = vmatprep.mubr.f32.mxu0 0.0
        %617 = vmatmul.mubr.f32.gmra.mxu0 %v541
        %v618 = vpop.f32.mrf.mxu0
        %v619 = vadd.f32 0.0, %v618
        %v620 = vpop.f32.mrf.mxu0
        %621 = vmatprep.mubr.f32.mxu0 0.0
        %622 = vmatmul.mubr.f32.gmra.mxu0 %v544
        %v623 = vpop.f32.mrf.mxu0
        %v624 = vadd.f32 0.0, %v623
        %v625 = vpop.f32.mrf.mxu0
        %626 = vmatprep.mubr.f32.mxu0 0.0
        %627 = vmatmul.mubr.f32.gmra.mxu0 %v547
        %v628 = vpop.f32.mrf.mxu0
        %v629 = vadd.f32 0.0, %v628
        %v630 = vpop.f32.mrf.mxu0
        %631 = vmatprep.mubr.f32.mxu0 0.0
        %632 = vmatmul.mubr.f32.gmra.mxu0 %v550
        %v633 = vpop.f32.mrf.mxu0
        %v634 = vadd.f32 0.0, %v633
        %v635 = vpop.f32.mrf.mxu0
        %636 = vdwg.mxu0
        %s637 = scalar_lea.vmem %s2, 32
        %v638 = vld [vmem:[%s637] sm:$0xff]
        %v639 = vld [vmem:[%s637 + $0x8] sm:$0xff]
        %v640 = vld [vmem:[%s637 + $0x10] sm:$0xff]
        %v641 = vld [vmem:[%s637 + $0x18] sm:$0xff]
        %643 = vset.pattern.permute.xlu0 0
        %644 = vperm.xlu0 %643, %v638
        %v645 = vpop.permute.xlu0 %644
        %648 = vset.pattern.permute.xlu0 0
        %649 = vperm.xlu0 %648, %v639
        %v650 = vpop.permute.xlu0 %649
        %653 = vset.pattern.permute.xlu0 0
        %654 = vperm.xlu0 %653, %v640
        %v655 = vpop.permute.xlu0 %654
        %658 = vset.pattern.permute.xlu0 0
        %659 = vperm.xlu0 %658, %v641
        %v660 = vpop.permute.xlu0 %659
        %v662 = vmul.f32 %v619, %v645
        %v663 = vmul.f32 %v624, %v650
        %v664 = vmul.f32 %v629, %v655
        %v665 = vmul.f32 %v634, %v660
        %s666 = scalar_lea.vmem %s3, 32
        %v667 = vld [vmem:[%s666] sm:$0xff]
        %v668 = vld [vmem:[%s666 + $0x8] sm:$0xff]
        %v669 = vld [vmem:[%s666 + $0x10] sm:$0xff]
        %v670 = vld [vmem:[%s666 + $0x18] sm:$0xff]
        %672 = vset.pattern.permute.xlu0 0
        %673 = vperm.xlu0 %672, %v667
        %v674 = vpop.permute.xlu0 %673
        %677 = vset.pattern.permute.xlu0 0
        %678 = vperm.xlu0 %677, %v668
        %v679 = vpop.permute.xlu0 %678
        %682 = vset.pattern.permute.xlu0 0
        %683 = vperm.xlu0 %682, %v669
        %v684 = vpop.permute.xlu0 %683
        %687 = vset.pattern.permute.xlu0 0
        %688 = vperm.xlu0 %687, %v670
        %v689 = vpop.permute.xlu0 %688
        %v691 = vsub.f32 %v662, %v674
        %v692 = vsub.f32 %v663, %v679
        %v693 = vsub.f32 %v664, %v684
        %v694 = vsub.f32 %v665, %v689
        %v695 = vmax.f32 %v691, -1.0
        %v696 = vmax.f32 %v692, -1.0
        %v697 = vmax.f32 %v693, -1.0
        %v698 = vmax.f32 %v694, -1.0
        %v699 = vmin.f32 %v695, 1.0
        %v700 = vmin.f32 %v696, 1.0
        %v701 = vmin.f32 %v697, 1.0
        %v702 = vmin.f32 %v698, 1.0
        %s703 = scalar_lea.vmem %s4, 32
        %v704 = vld [vmem:[%s703] sm:$0xff]
        %v705 = vld [vmem:[%s703 + $0x8] sm:$0xff]
        %v706 = vld [vmem:[%s703 + $0x10] sm:$0xff]
        %v707 = vld [vmem:[%s703 + $0x18] sm:$0xff]
        %709 = vset.pattern.permute.xlu0 0
        %710 = vperm.xlu0 %709, %v704
        %v711 = vpop.permute.xlu0 %710
        %714 = vset.pattern.permute.xlu0 0
        %715 = vperm.xlu0 %714, %v705
        %v716 = vpop.permute.xlu0 %715
        %719 = vset.pattern.permute.xlu0 0
        %720 = vperm.xlu0 %719, %v706
        %v721 = vpop.permute.xlu0 %720
        %724 = vset.pattern.permute.xlu0 0
        %725 = vperm.xlu0 %724, %v707
        %v726 = vpop.permute.xlu0 %725
        %v728 = vmul.f32 %v711, %v699
        %v729 = vmul.f32 %v716, %v700
        %v730 = vmul.f32 %v721, %v701
        %v731 = vmul.f32 %v726, %v702
        %s732 = scalar_lea.vmem %s5, 32
        %v733 = vld [vmem:[%s732] sm:$0xff]
        %v734 = vld [vmem:[%s732 + $0x8] sm:$0xff]
        %v735 = vld [vmem:[%s732 + $0x10] sm:$0xff]
        %v736 = vld [vmem:[%s732 + $0x18] sm:$0xff]
        %v737 = vmul.f32 %v699, %v699
        %v738 = vmul.f32 %v700, %v700
        %v739 = vmul.f32 %v701, %v701
        %v740 = vmul.f32 %v702, %v702
        %v741 = vmul.f32 %v737, %v699
        %v742 = vmul.f32 %v738, %v700
        %v743 = vmul.f32 %v739, %v701
        %v744 = vmul.f32 %v740, %v702
        %746 = vset.pattern.permute.xlu0 0
        %747 = vperm.xlu0 %746, %v733
        %v748 = vpop.permute.xlu0 %747
        %751 = vset.pattern.permute.xlu0 0
        %752 = vperm.xlu0 %751, %v734
        %v753 = vpop.permute.xlu0 %752
        %756 = vset.pattern.permute.xlu0 0
        %757 = vperm.xlu0 %756, %v735
        %v758 = vpop.permute.xlu0 %757
        %761 = vset.pattern.permute.xlu0 0
        %762 = vperm.xlu0 %761, %v736
        %v763 = vpop.permute.xlu0 %762
        %v765 = vmul.f32 %v748, %v741
        %v766 = vmul.f32 %v753, %v742
        %v767 = vmul.f32 %v758, %v743
        %v768 = vmul.f32 %v763, %v744
        %v769 = vsub.f32 %v728, %v765
        %v770 = vsub.f32 %v729, %v766
        %v771 = vsub.f32 %v730, %v767
        %v772 = vsub.f32 %v731, %v768
        %s773 = scalar_lea.vmem %s1, 64
        %v774 = vld [vmem:[%s773] sm:$0xff]
        %v775 = vld [vmem:[%s773 + $0x8] sm:$0xff]
        %v776 = vld [vmem:[%s773 + $0x10] sm:$0xff]
        %v777 = vld [vmem:[%s773 + $0x18] sm:$0xff]
        %v779 = vsel %vm305, %v774, 0
        %v782 = vsel %vm305, %v775, 0
        %v785 = vsel %vm305, %v776, 0
        %v788 = vsel %vm305, %v777, 0
        %790 = vmatprep.subr.mxu0 0.0
        %791 = vmatpush1.msra.mxu0 0.0
        %792 = vmatprep.subr.mxu0 0.0
        %793 = vmatpush1.msra.mxu0 0.0
        %794 = vmatprep.subr.mxu0 0.0
        %795 = vmatpush1.msra.mxu0 0.0
        %796 = vmatprep.subr.mxu0 0.0
        %797 = vmatpush1.msra.mxu0 0.0
        %798 = vmatprep.subr.mxu0 0.0
        %799 = vmatpush1.msra.mxu0 0.0
        %800 = vmatprep.subr.mxu0 0.0
        %801 = vmatpush1.msra.mxu0 0.0
        %802 = vmatprep.subr.mxu0 0.0
        %803 = vmatpush1.msra.mxu0 0.0
        %804 = vmatprep.subr.mxu0 0.0
        %805 = vmatpush1.msra.mxu0 0.0
        %806 = vmatprep.subr.mxu0 0.0
        %807 = vmatpush1.msra.mxu0 0.0
        %808 = vmatprep.subr.mxu0 0.0
        %809 = vmatpush1.msra.mxu0 0.0
        %810 = vmatprep.subr.mxu0 0.0
        %811 = vmatpush1.msra.mxu0 0.0
        %812 = vmatprep.subr.mxu0 0.0
        %813 = vmatpush1.msra.mxu0 0.0
        %814 = vmatprep.subr.mxu0 0.0
        %815 = vmatpush1.msra.mxu0 %v772
        %816 = vmatprep.subr.mxu0 0.0
        %817 = vmatpush1.msra.mxu0 %v771
        %818 = vmatprep.subr.mxu0 0.0
        %819 = vmatpush1.msra.mxu0 %v770
        %820 = vmatprep.subr.mxu0 0.0
        %821 = vmatpush1.msra.mxu0 %v769
        %822 = vmatprep.subr.mxu0 0.0
        %823 = vmatpush2.msra.mxu0 0.0
        %824 = vmatprep.subr.mxu0 0.0
        %825 = vmatpush2.msra.mxu0 0.0
        %826 = vmatprep.subr.mxu0 0.0
        %827 = vmatpush2.msra.mxu0 0.0
        %828 = vmatprep.subr.mxu0 0.0
        %829 = vmatpush2.msra.mxu0 0.0
        %830 = vmatprep.subr.mxu0 0.0
        %831 = vmatpush2.msra.mxu0 0.0
        %832 = vmatprep.subr.mxu0 0.0
        %833 = vmatpush2.msra.mxu0 0.0
        %834 = vmatprep.subr.mxu0 0.0
        %835 = vmatpush2.msra.mxu0 0.0
        %836 = vmatprep.subr.mxu0 0.0
        %837 = vmatpush2.msra.mxu0 0.0
        %838 = vmatprep.subr.mxu0 0.0
        %839 = vmatpush2.msra.mxu0 0.0
        %840 = vmatprep.subr.mxu0 0.0
        %841 = vmatpush2.msra.mxu0 0.0
        %842 = vmatprep.subr.mxu0 0.0
        %843 = vmatpush2.msra.mxu0 0.0
        %844 = vmatprep.subr.mxu0 0.0
        %845 = vmatpush2.msra.mxu0 0.0
        %846 = vmatprep.subr.mxu0 0.0
        %847 = vmatpush2.msra.mxu0 0.0
        %848 = vmatprep.subr.mxu0 0.0
        %849 = vmatpush2.msra.mxu0 0.0
        %850 = vmatprep.subr.mxu0 0.0
        %851 = vmatpush2.msra.mxu0 0.0
        %852 = vmatprep.subr.mxu0 0.0
        %853 = vmatpush2.msra.mxu0 0.0
        %854 = vmatprep.mubr.f32.mxu0 0.0
        %855 = vmatmul.mubr.f32.gmra.mxu0 %v779
        %v856 = vpop.f32.mrf.mxu0
        %v857 = vadd.f32 0.0, %v856
        %v858 = vpop.f32.mrf.mxu0
        %859 = vmatprep.mubr.f32.mxu0 0.0
        %860 = vmatmul.mubr.f32.gmra.mxu0 %v782
        %v861 = vpop.f32.mrf.mxu0
        %v862 = vadd.f32 0.0, %v861
        %v863 = vpop.f32.mrf.mxu0
        %864 = vmatprep.mubr.f32.mxu0 0.0
        %865 = vmatmul.mubr.f32.gmra.mxu0 %v785
        %v866 = vpop.f32.mrf.mxu0
        %v867 = vadd.f32 0.0, %v866
        %v868 = vpop.f32.mrf.mxu0
        %869 = vmatprep.mubr.f32.mxu0 0.0
        %870 = vmatmul.mubr.f32.gmra.mxu0 %v788
        %v871 = vpop.f32.mrf.mxu0
        %v872 = vadd.f32 0.0, %v871
        %v873 = vpop.f32.mrf.mxu0
        %874 = vdwg.mxu0
        %875 = vst [vmem:[%s296] sm:$0xff] %v857
        %876 = vst [vmem:[%s296 + $0x8] sm:$0xff] %v862
        %877 = vst [vmem:[%s296 + $0x10] sm:$0xff] %v867
        %878 = vst [vmem:[%s296 + $0x18] sm:$0xff] %v872
        %s879 = sand.u32 %s159, 1
        %s880 = scalar_lea.sflag [#allocation4], %s879
        %s881 = sand.u32 %s159, 1
        %s882 = smul.addr %s881, 32
        %s883 = scalar_lea.vmem [#allocation3], %s882
        // Predicated region
        $region83: #{tpu_custom_call.1} parent=77 // pred_check
          %p884 = pneg %p169
        $region84: #{tpu_custom_call.1} parent=77 // pred_check_branch
          %886 = sbr.rel (%p884) target = $region86
        $region85: #{tpu_custom_call.1} parent=77 // pred_region
          %s888 = ssub.s32 512, 512
          %889 = vsyncadd %s880, %s888
          %s890 = smul.addr %s20, 128
          %s891 = scalar_lea.hbm %s6, %s890
          %s892 = sshll.u32 %s883, 4
          %s893 = int_to_ptr.vmem [resolvable:$true] %s892
          %898 = dma.vmem_to_hbm [thread:$0]  %s893, 512, %s891, %s880, 128, 256, 8
        $region86: #{tpu_custom_call.1} parent=77 // pred_fallthru
          _
      $region78: #{tpu_custom_call.1} parent=5 // pred_fallthru
        _
      %p899 = scmp.le.s32.totalorder 2, %s15
      // Predicated region
      $region87: #{tpu_custom_call.1} parent=5 // pred_check
        %p900 = pneg %p899
      $region88: #{tpu_custom_call.1} parent=5 // pred_check_branch
        %902 = sbr.rel (%p900) target = $region90
      $region89: #{tpu_custom_call.1} parent=5 // pred_region
        %s903 = ssub.s32 %s15, 2
        // Predicated region
        $region91: #{tpu_custom_call.1} parent=89 // pred_check
          %p904 = pneg %p175
        $region92: #{tpu_custom_call.1} parent=89 // pred_check_branch
          %906 = sbr.rel (%p904) target = $region94
        $region93: #{tpu_custom_call.1} parent=89 // pred_region
          %s907 = sand.u32 %s160, 1
          %s908 = scalar_lea.sflag [#allocation4], %s907
          %s909 = sand.u32 %s160, 1
          %s910 = smul.addr %s909, 32
          %s911 = scalar_lea.vmem [#allocation3], %s910
          %912 = dma.done %s908, 512
        $region94: #{tpu_custom_call.1} parent=89 // pred_fallthru
          _
      $region90: #{tpu_custom_call.1} parent=5 // pred_fallthru
        _
    $region6: #{tpu_custom_call.1} parent=1 // loop_footer
      %s19 = sadd.s32 1, %s15
    $region7: #{tpu_custom_call.1} parent=1 // loop_footer_branch
      %14 = sbr.rel target = $region3
    $region8: #{tpu_custom_call.1} parent=1 // loop_exit
      _
    %913 = vsyncpa [#allocation4], 1
    %s914 = scalar_lea.sflag [#allocation4], 1
    %915 = vsyncpa %s914, 1

</llo_original>
